<compile_context>
chip_gen: v5e
topology: v5e:2x2
jax: 0.10.0
libtpu: 0.0.40
codegen_flags: <defaults>
</compile_context>

<pallas_src>
import functools

import jax
import jax.numpy as jnp
from jax.experimental import pallas as pl
from jax.experimental.pallas import tpu as pltpu

EPS = 1e-5  # nn.GroupNorm default eps


# ----------------------- chip-aware VMEM budgeting ---------------------------
def _vmem_capacity_bytes():
    try:
        info = pltpu.get_tpu_info()
        cap = getattr(info, "vmem_capacity_bytes", None)
        if cap:
            return int(cap)
    except Exception:
        pass
    return 128 * 1024 * 1024  # v5e/v6e physical VMEM


def _vmem_budgets():
    cap = _vmem_capacity_bytes()
    # 3/4 of physical (48 MiB on v7x's 64 MiB, ~96 MiB on v5e/v6e's 128 MiB),
    # and a conservative fraction of that for the explicit per-step tile budget.
    vmem_limit = min(cap * 3 // 4, 100 * 1024 * 1024)
    tile_budget = int(vmem_limit * 0.6)
    return vmem_limit, tile_budget


def _derive_frames_per_block(n, per_frame_bytes, budget):
    """Largest divisor of n whose double-buffered footprint fits the budget,
    preferring enough grid steps (~8) for the DMA pipeline to overlap."""
    divisors = [d for d in range(1, n + 1) if n % d == 0]
    fits = [d for d in divisors if 2 * d * per_frame_bytes <= budget]
    if not fits:
        return 1
    min_steps = min(8, n)
    pipelined = [d for d in fits if n // d >= min_steps]
    return max(pipelined) if pipelined else max(fits)


def _derive_hw_block(hw, per_lane_bytes, budget, batch):
    """Largest layout-legal lane block (full hw, or a 128-multiple divisor)
    fitting the budget; keep >= 2 parallel blocks for v7x's two TensorCores."""
    cands = [hw] + [c for c in (2048, 1024, 512, 384, 256, 128)
                    if c < hw and hw % c == 0]
    fitting = [c for c in cands if c * per_lane_bytes <= budget]
    if not fitting:
        return cands[-1]                      # smallest legal option
    two_core = [c for c in fitting if batch * (hw // c) >= 2]
    return two_core[0] if two_core else fitting[0]


# --------------------------- stage 1: GroupNorm + to_qkv ---------------------
def _norm_qkv_kernel(x_ref, gm_ref, gamma_ref, beta_ref, w_ref, b_ref, o_ref, *,
                     compute_dtype):
    """x_ref: (F, C, HW) block of frames -> o_ref: (F, 3*hd, HW) qkv block
    (channels head-major: [q_h | k_h | v_h] per head)."""
    x = x_ref[...].astype(jnp.float32)                          # (F, C, HW)
    f_blk = x.shape[0]

    # Two-pass GroupNorm: spatial sums are lane reductions; the tiny per-group
    # averaging is an (F,C) x (C,C) matmul with a pre-scaled membership matrix.
    gm = gm_ref[...]                                            # (C, C)
    s1 = jnp.sum(x, axis=2)                                     # (F, C)
    mean = jnp.dot(s1, gm, preferred_element_type=jnp.float32)
    xc = x - mean[:, :, None]
    s2 = jnp.sum(xc * xc, axis=2)                               # (F, C)
    var = jnp.dot(s2, gm, preferred_element_type=jnp.float32)
    # gamma folded into the rsqrt scale: one (F,C) multiply instead of a full
    # (F,C,HW) vector pass.
    scale = jax.lax.rsqrt(var + EPS) * gamma_ref[...]           # (F,C)*(1,C)
    xn = xc * scale[:, :, None] + beta_ref[...]                 # (F, C, HW)

    # 1x1 conv == (3*hd, C) @ (C, HW) per frame; HW stays on the lane axis.
    w = w_ref[...].astype(compute_dtype)                        # (3*hd, C)
    bias = b_ref[...]                                           # (3*hd, 1) f32
    for f in range(f_blk):                                      # static, unrolled
        y = jnp.dot(w, xn[f].astype(compute_dtype),
                    preferred_element_type=jnp.float32) + bias
        o_ref[f] = y.astype(o_ref.dtype)


# ------------------- stage 2: feature-axis attention + to_out ----------------
def _attn_out_kernel(qkv_ref, w_ref, b_ref, o_ref, *, hidden, scale,
                     compute_dtype, approx):
    """One (spatial-block, batch, head) grid step.

    qkv_ref: (T, 3*hidden, P) fused per-head block ([q|k|v] on the channel
    axis, P spatial positions on lanes).  Scores are DxD per position,
    contracted over T, softmax over the last hidden axis.  The per-head to_out
    partial projection is accumulated directly into the resident f32 o_ref
    block across the head grid axis (assign+bias on head 0).
    """
    h_idx = pl.program_id(2)
    is_first = h_idx == 0
    d = hidden
    t_len = qkv_ref.shape[0]

    def q_t(tt):  # attention scale folded into the (cheaper) per-frame q load
        return qkv_ref[tt, 0:d, :].astype(jnp.float32) * scale

    def k_t(tt):
        return qkv_ref[tt, d:2 * d, :].astype(jnp.float32)

    # s[e, dd, n] = sum_t k[t, e, n] * q[t, dd, n]  -- lane-dense VPU FMAs
    # (the T/D contraction is too small to feed the MXU usefully).
    s = k_t(0)[:, None, :] * q_t(0)[None, :, :]
    for tt in range(1, t_len):
        s = s + k_t(tt)[:, None, :] * q_t(tt)[None, :, :]

    # softmax over e == the leading axis -> pure VPU (no cross-lane work);
    # the reciprocal runs on the otherwise idle EUP slot when approx=True.
    m = jnp.max(s, axis=0, keepdims=True)
    p = jnp.exp(s - m)
    denom = jnp.sum(p, axis=0, keepdims=True)
    attn = p * pl.reciprocal(denom, approx=approx)              # (D_e, D_d, P)

    w_h = w_ref[0].astype(compute_dtype)                        # (proj, D)
    bias = b_ref[...]                                           # (proj, 1) f32

    for tt in range(t_len):
        v_tt = qkv_ref[tt, 2 * d:3 * d, :].astype(jnp.float32)  # (D, P)
        ov = jnp.sum(attn * v_tt[:, None, :], axis=0)           # (D, P)
        pr = jnp.dot(w_h, ov.astype(compute_dtype),
                     preferred_element_type=jnp.float32)        # (proj, P)

        @pl.when(is_first)
        def _assign(pr=pr, tt=tt):
            o_ref[tt] = pr + bias          # bias folded into the first head

        @pl.when(h_idx != 0)
        def _accum(pr=pr, tt=tt):
            o_ref[tt] = o_ref[tt] + pr


# ----------------------------------- wrapper ---------------------------------
def temporal_attention_block(x, params, *, num_heads, hidden, num_groups,
                             compute_dtype=jnp.bfloat16,
                             frames_per_block=None, hw_block=None,
                             approx_softmax=True):
    """x: (b, t, c, h, w) float32.  Returns (b, t, proj, h, w) float32."""
    b, t, c, h, w = x.shape
    hw, n = h * w, b * t
    hd = num_heads * hidden
    proj = params['w_out'].shape[1]
    cg = c // num_groups
    db = jnp.dtype(compute_dtype).itemsize

    sublane = 32 // db                       # 8 for f32, 16 for bf16
    assert hidden % sublane == 0, (
        f"hidden={hidden} must be a multiple of {sublane} for "
        f"{jnp.dtype(compute_dtype).name} so per-head q/k/v slices land on "
        "sublane-tile boundaries")

    vmem_limit, tile_budget = _vmem_budgets()

    # Stage-1 tiling: frames per block (full hw per frame — GroupNorm reduces
    # over the whole spatial extent).
    s1_per_frame = hw * (4 * c + db * 3 * hd)
    fb = frames_per_block or _derive_frames_per_block(n, s1_per_frame, tile_budget)
    assert n % fb == 0

    # Stage-2 tiling: spatial lanes per block.
    s2_per_lane = (2 * t * 3 * hidden * db   # double-buffered fused qkv tile
                   + 2 * t * proj * 4        # resident f32 output block
                   + 4 * hidden * hidden * 4)  # s / p / attn f32 temporaries
    hw_blk = hw_block or _derive_hw_block(hw, s2_per_lane, tile_budget, b)
    assert hw % hw_blk == 0
    assert hw_blk % 128 == 0 or hw_blk == hw, (hw_blk, hw)

    x_f = x.reshape(n, c, hw)                # free reshape, no data movement

    # Scaled group-membership matrix: (per-channel spatial sums) @ gm gives the
    # per-group mean broadcast back onto channels.
    gid = jnp.arange(c) // cg
    gm = (gid[:, None] == gid[None, :]).astype(jnp.float32) / float(cg * hw)

    # Head-major [q_h|k_h|v_h] permutation of the to_qkv projection (host-side,
    # free) so stage 2 needs a single fused per-head BlockSpec.
    w_qkv_hm = (params['w_qkv'].reshape(3, num_heads, hidden, c)
                .transpose(1, 0, 2, 3).reshape(3 * hd, c))
    b_qkv_hm = (params['b_qkv'].reshape(3, num_heads, hidden, 1)
                .transpose(1, 0, 2, 3).reshape(3 * hd, 1))
    gamma_row = params['gamma'].reshape(1, c)     # lane layout for the fold

    # ---- stage 1: GroupNorm + to_qkv, output (b*t, 3*hd, hw), hw lane-dense --
    qkv = pl.pallas_call(
        functools.partial(_norm_qkv_kernel, compute_dtype=compute_dtype),
        out_shape=jax.ShapeDtypeStruct((n, 3 * hd, hw), compute_dtype),
        grid=(n // fb,),
        in_specs=[
            pl.BlockSpec((fb, c, hw), lambda i: (i, 0, 0)),
            pl.BlockSpec((c, c), lambda i: (0, 0)),        # resident weights
            pl.BlockSpec((1, c), lambda i: (0, 0)),
            pl.BlockSpec((c, 1), lambda i: (0, 0)),
            pl.BlockSpec((3 * hd, c), lambda i: (0, 0)),
            pl.BlockSpec((3 * hd, 1), lambda i: (0, 0)),
        ],
        out_specs=pl.BlockSpec((fb, 3 * hd, hw), lambda i: (i, 0, 0)),
        compiler_params=pltpu.CompilerParams(
            dimension_semantics=("parallel",),
            vmem_limit_bytes=vmem_limit),
    )(x_f, gm, gamma_row, params['beta'], w_qkv_hm, b_qkv_hm)

    # Per-head to_out weight, (heads, proj, hidden): each head gets a
    # block-spec-compliant (1, proj, hidden) tile (no in-kernel transpose).
    w_out3 = params['w_out'].reshape(num_heads, hidden, proj).transpose(0, 2, 1)

    # ---- stage 2: attention + to_out (accumulated over the head axis) --------
    # TODO(synk): on v5e (low HBM BW) the qkv round trip could additionally be
    # fused away by recomputing GroupNorm stats in a tiny pre-pass; kept as two
    # stages here since v6e/v7x hide that traffic.
    out = pl.pallas_call(
        functools.partial(_attn_out_kernel, hidden=hidden,
                          scale=float(hidden) ** -0.5,
                          compute_dtype=compute_dtype,
                          approx=approx_softmax),
        out_shape=jax.ShapeDtypeStruct((n, proj, hw), jnp.float32),
        grid=(hw // hw_blk, b, num_heads),
        in_specs=[
            pl.BlockSpec((t, 3 * hidden, hw_blk),
                         lambda pi, bi, hi: (bi, hi, pi)),
            pl.BlockSpec((1, proj, hidden), lambda pi, bi, hi: (hi, 0, 0)),
            pl.BlockSpec((proj, 1), lambda pi, bi, hi: (0, 0)),
        ],
        out_specs=pl.BlockSpec((t, proj, hw_blk),
                               lambda pi, bi, hi: (bi, 0, pi)),
        compiler_params=pltpu.CompilerParams(
            dimension_semantics=("parallel", "parallel", "arbitrary"),
            vmem_limit_bytes=vmem_limit),
    )(qkv, w_out3, params['b_out'])

    return out.reshape(b, t, proj, h, w)     # free reshape


# ----------------------------- reference (pure JAX) --------------------------
def reference_forward(x, params, *, num_heads, hidden, num_groups):
    b, t, c, h, w = x.shape
    hw = h * w
    hd = num_heads * hidden
    g, cg = num_groups, c // num_groups
    xs = x.reshape(b * t, c, hw).astype(jnp.float32)
    xg = xs.reshape(b * t, g, cg * hw)
    mean = xg.mean(axis=2, keepdims=True)
    var = ((xg - mean) ** 2).mean(axis=2, keepdims=True)
    xn = ((xg - mean) / jnp.sqrt(var + EPS)).reshape(b * t, c, hw)
    xn = xn * params['gamma'].reshape(1, c, 1) + params['beta'].reshape(1, c, 1)
    qkv = (jnp.einsum('oc,nch->noh', params['w_qkv'], xn)
           + params['b_qkv'].reshape(1, 3 * hd, 1))                 # (bt,3hd,hw)
    # '(b t) c h w -> (b h w) t c'
    qkv = qkv.reshape(b, t, 3 * hd, hw).transpose(0, 3, 1, 2).reshape(b * hw, t, 3 * hd)
    q, k, v = jnp.split(qkv, 3, axis=-1)
    shp = (b * hw, t, num_heads, hidden)
    q, k, v = q.reshape(shp), k.reshape(shp), v.reshape(shp)
    scale = hidden ** (-0.5)
    # qk[n,i,d,e] = sum_t q[n,t,i,d] k[n,t,i,e]
    qk = jnp.sum(q[:, :, :, :, None] * k[:, :, :, None, :], axis=1) * scale
    att = jax.nn.softmax(qk, axis=-1)                               # (n,i,d,e)
    # score[n,t,i,d] = sum_e att[n,i,d,e] v[n,t,i,e]
    score = jnp.sum(att[:, None, :, :, :] * v[:, :, :, None, :], axis=-1)
    # '(b h w) t heads c -> (b t) (heads c) h w'
    score = score.reshape(b, hw, t, hd).transpose(0, 2, 3, 1).reshape(b * t, hd, hw)
    out = (jnp.einsum('cp,nch->nph', params['w_out'], score)
           + params['b_out'].reshape(1, -1, 1))
    return out.reshape(b, t, -1, h, w)


# ----------------------------------- params ----------------------------------
def init_params(key, in_channels, hidden, heads, proj):
    ks = jax.random.split(key, 6)
    hd = heads * hidden
    return dict(
        gamma=(1.0 + 0.1 * jax.random.normal(ks[0], (in_channels, 1))).astype(jnp.float32),
        beta=(0.1 * jax.random.normal(ks[1], (in_channels, 1))).astype(jnp.float32),
        w_qkv=(0.2 * jax.random.normal(ks[2], (3 * hd, in_channels))).astype(jnp.float32),
        b_qkv=(0.1 * jax.random.normal(ks[3], (3 * hd, 1))).astype(jnp.float32),
        w_out=(0.2 * jax.random.normal(ks[4], (hd, proj))).astype(jnp.float32),
        b_out=(0.1 * jax.random.normal(ks[5], (proj, 1))).astype(jnp.float32),
    )


if __name__ == "__main__":
    b, t, h, w = 2, 8, 8, 8
    in_channels, hidden, heads, proj, groups = 8, 16, 2, 8, 4

    key = jax.random.PRNGKey(0)
    kx, kp = jax.random.split(key)
    x = jax.random.normal(kx, (b, t, in_channels, h, w), dtype=jnp.float32)
    params = init_params(kp, in_channels, hidden, heads, proj)

    ref = reference_forward(x, params, num_heads=heads, hidden=hidden,
                            num_groups=groups)

    # Exact-semantics path: all-f32, exact softmax reciprocal.
    out_f32 = temporal_attention_block(x, params, num_heads=heads, hidden=hidden,
                                       num_groups=groups,
                                       compute_dtype=jnp.float32,
                                       approx_softmax=False)
    out_f32 = jax.block_until_ready(out_f32)
    assert out_f32.shape == (b, t, proj, h, w), out_f32.shape
    err_f32 = float(jnp.max(jnp.abs(out_f32 - ref)))
    assert err_f32 < 1e-3, err_f32

    # Fast path: bf16 MXU operands + bf16 qkv intermediate + approx (EUP)
    # softmax reciprocal.  f32 stats / softmax logits / accumulation.
    out_bf16 = temporal_attention_block(x, params, num_heads=heads, hidden=hidden,
                                        num_groups=groups,
                                        compute_dtype=jnp.bfloat16,
                                        approx_softmax=True)
    out_bf16 = jax.block_until_ready(out_bf16)
    err_bf16 = float(jnp.max(jnp.abs(out_bf16 - ref)))
    assert err_bf16 < 1e-1, err_bf16

    print("KERNEL_OK")
</pallas_src>

<mosaic_0001>
module attributes {stable_mosaic.version = 11 : i64} {
  func.func @_norm_qkv_kernel(%arg0: i32, %arg1: memref<2x8x64xf32, #tpu.memory_space<vmem>>, %arg2: memref<8x8xf32, #tpu.memory_space<vmem>>, %arg3: memref<1x8xf32, #tpu.memory_space<vmem>>, %arg4: memref<8x1xf32, #tpu.memory_space<vmem>>, %arg5: memref<96x8xf32, #tpu.memory_space<vmem>>, %arg6: memref<96x1xf32, #tpu.memory_space<vmem>>, %arg7: memref<2x96x64xf32, #tpu.memory_space<vmem>>) attributes {dimension_semantics = [#tpu.dimension_semantics<parallel>], iteration_bounds = array<i64: 8>, scalar_prefetch = 0 : i64, scratch_operands = 0 : i64, tpu.core_type = #tpu.core_type<tc>, window_params = [{transform_indices = @transform_0, window_bounds = array<i64: 2, 8, 64>}, {pipeline_mode = #tpu.pipeline_mode<synchronous>, transform_indices = @transform_1, window_bounds = array<i64: 8, 8>}, {pipeline_mode = #tpu.pipeline_mode<synchronous>, transform_indices = @transform_2, window_bounds = array<i64: 1, 8>}, {pipeline_mode = #tpu.pipeline_mode<synchronous>, transform_indices = @transform_3, window_bounds = array<i64: 8, 1>}, {pipeline_mode = #tpu.pipeline_mode<synchronous>, transform_indices = @transform_4, window_bounds = array<i64: 96, 8>}, {pipeline_mode = #tpu.pipeline_mode<synchronous>, transform_indices = @transform_5, window_bounds = array<i64: 96, 1>}, {transform_indices = @transform_6, window_bounds = array<i64: 2, 96, 64>}]} {
    %c0 = arith.constant 0 : index
    %c0_0 = arith.constant 0 : index
    %c0_1 = arith.constant 0 : index
    %0 = vector.load %arg1[%c0, %c0_0, %c0_1] : memref<2x8x64xf32, #tpu.memory_space<vmem>>, vector<2x8x64xf32>
    %c0_2 = arith.constant 0 : index
    %c0_3 = arith.constant 0 : index
    %1 = vector.load %arg2[%c0_2, %c0_3] : memref<8x8xf32, #tpu.memory_space<vmem>>, vector<8x8xf32>
    %cst = arith.constant dense<0.000000e+00> : vector<2x8xf32>
    %2 = vector.multi_reduction <add>, %0, %cst [2] : vector<2x8x64xf32> to vector<2x8xf32>
    %cst_4 = arith.constant dense<0.000000e+00> : vector<2x8xf32>
    %3 = tpu.matmul %2, %1, %cst_4 {dimension_numbers = #tpu.dot_dimension_numbers<[1], [0], [0], [1], [0, 0, 1, 1], [], []>} : vector<2x8xf32>, vector<8x8xf32>, vector<2x8xf32> -> vector<2x8xf32>
    %4 = vector.shape_cast %3 : vector<2x8xf32> to vector<2x8x1xf32>
    %5 = vector.broadcast %4 : vector<2x8x1xf32> to vector<2x8x64xf32>
    %6 = arith.subf %0, %5 : vector<2x8x64xf32>
    %7 = arith.mulf %6, %6 : vector<2x8x64xf32>
    %cst_5 = arith.constant dense<0.000000e+00> : vector<2x8xf32>
    %8 = vector.multi_reduction <add>, %7, %cst_5 [2] : vector<2x8x64xf32> to vector<2x8xf32>
    %cst_6 = arith.constant dense<0.000000e+00> : vector<2x8xf32>
    %9 = tpu.matmul %8, %1, %cst_6 {dimension_numbers = #tpu.dot_dimension_numbers<[1], [0], [0], [1], [0, 0, 1, 1], [], []>} : vector<2x8xf32>, vector<8x8xf32>, vector<2x8xf32> -> vector<2x8xf32>
    %cst_7 = arith.constant 9.99999974E-6 : f32
    %10 = vector.broadcast %cst_7 : f32 to vector<2x8xf32>
    %11 = arith.addf %9, %10 : vector<2x8xf32>
    %12 = math.rsqrt %11 : vector<2x8xf32>
    %c0_8 = arith.constant 0 : index
    %c0_9 = arith.constant 0 : index
    %13 = vector.load %arg3[%c0_8, %c0_9] : memref<1x8xf32, #tpu.memory_space<vmem>>, vector<1x8xf32>
    %14 = vector.broadcast %13 : vector<1x8xf32> to vector<2x8xf32>
    %15 = arith.mulf %12, %14 : vector<2x8xf32>
    %16 = vector.shape_cast %15 : vector<2x8xf32> to vector<2x8x1xf32>
    %17 = vector.broadcast %16 : vector<2x8x1xf32> to vector<2x8x64xf32>
    %18 = arith.mulf %6, %17 : vector<2x8x64xf32>
    %c0_10 = arith.constant 0 : index
    %c0_11 = arith.constant 0 : index
    %19 = vector.load %arg4[%c0_10, %c0_11] : memref<8x1xf32, #tpu.memory_space<vmem>>, vector<8x1xf32>
    %20 = vector.shape_cast %19 : vector<8x1xf32> to vector<1x8x1xf32>
    %21 = vector.broadcast %20 : vector<1x8x1xf32> to vector<2x8x64xf32>
    %22 = arith.addf %18, %21 : vector<2x8x64xf32>
    %c0_12 = arith.constant 0 : index
    %c0_13 = arith.constant 0 : index
    %23 = vector.load %arg5[%c0_12, %c0_13] : memref<96x8xf32, #tpu.memory_space<vmem>>, vector<96x8xf32>
    %c0_14 = arith.constant 0 : index
    %c0_15 = arith.constant 0 : index
    %24 = vector.load %arg6[%c0_14, %c0_15] : memref<96x1xf32, #tpu.memory_space<vmem>>, vector<96x1xf32>
    %25 = vector.extract_strided_slice %22 {offsets = [0, 0, 0], sizes = [1, 8, 64], strides = [1, 1, 1]} : vector<2x8x64xf32> to vector<1x8x64xf32>
    %26 = vector.shape_cast %25 : vector<1x8x64xf32> to vector<8x64xf32>
    %cst_16 = arith.constant dense<0.000000e+00> : vector<96x64xf32>
    %27 = tpu.matmul %23, %26, %cst_16 {dimension_numbers = #tpu.dot_dimension_numbers<[1], [0], [0], [1], [0, 0, 1, 1], [], []>} : vector<96x8xf32>, vector<8x64xf32>, vector<96x64xf32> -> vector<96x64xf32>
    %28 = vector.broadcast %24 : vector<96x1xf32> to vector<96x64xf32>
    %29 = arith.addf %27, %28 : vector<96x64xf32>
    %c0_17 = arith.constant 0 : index
    %c0_18 = arith.constant 0 : index
    %c0_19 = arith.constant 0 : index
    %30 = vector.load %arg7[%c0_17, %c0_18, %c0_19] : memref<2x96x64xf32, #tpu.memory_space<vmem>>, vector<1x96x64xf32>
    %31 = vector.shape_cast %30 : vector<1x96x64xf32> to vector<96x64xf32>
    %32 = vector.shape_cast %29 : vector<96x64xf32> to vector<1x96x64xf32>
    tpu.vector_store %arg7[%c0_17, %c0_18, %c0_19], %32 {strides = array<i32>} : memref<2x96x64xf32, #tpu.memory_space<vmem>>, vector<1x96x64xf32>,
    %33 = vector.extract_strided_slice %22 {offsets = [1, 0, 0], sizes = [1, 8, 64], strides = [1, 1, 1]} : vector<2x8x64xf32> to vector<1x8x64xf32>
    %34 = vector.shape_cast %33 : vector<1x8x64xf32> to vector<8x64xf32>
    %cst_20 = arith.constant dense<0.000000e+00> : vector<96x64xf32>
    %35 = tpu.matmul %23, %34, %cst_20 {dimension_numbers = #tpu.dot_dimension_numbers<[1], [0], [0], [1], [0, 0, 1, 1], [], []>} : vector<96x8xf32>, vector<8x64xf32>, vector<96x64xf32> -> vector<96x64xf32>
    %36 = vector.broadcast %24 : vector<96x1xf32> to vector<96x64xf32>
    %37 = arith.addf %35, %36 : vector<96x64xf32>
    %c1 = arith.constant 1 : index
    %c0_21 = arith.constant 0 : index
    %c0_22 = arith.constant 0 : index
    %38 = vector.load %arg7[%c1, %c0_21, %c0_22] : memref<2x96x64xf32, #tpu.memory_space<vmem>>, vector<1x96x64xf32>
    %39 = vector.shape_cast %38 : vector<1x96x64xf32> to vector<96x64xf32>
    %40 = vector.shape_cast %37 : vector<96x64xf32> to vector<1x96x64xf32>
    tpu.vector_store %arg7[%c1, %c0_21, %c0_22], %40 {strides = array<i32>} : memref<2x96x64xf32, #tpu.memory_space<vmem>>, vector<1x96x64xf32>,
    return
  }
  func.func @transform_0(%arg0: i32) -> (i32, i32, i32) {
    %c0_i32 = arith.constant 0 : i32
    %c0_i32_0 = arith.constant 0 : i32
    %c0_i32_1 = arith.constant 0 : i32
    return %arg0, %c0_i32, %c0_i32_0 : i32, i32, i32
  }
  func.func @transform_1(%arg0: i32) -> (i32, i32) {
    %c0_i32 = arith.constant 0 : i32
    %c0_i32_0 = arith.constant 0 : i32
    %c0_i32_1 = arith.constant 0 : i32
    return %c0_i32, %c0_i32_0 : i32, i32
  }
  func.func @transform_2(%arg0: i32) -> (i32, i32) {
    %c0_i32 = arith.constant 0 : i32
    %c0_i32_0 = arith.constant 0 : i32
    %c0_i32_1 = arith.constant 0 : i32
    return %c0_i32, %c0_i32_0 : i32, i32
  }
  func.func @transform_3(%arg0: i32) -> (i32, i32) {
    %c0_i32 = arith.constant 0 : i32
    %c0_i32_0 = arith.constant 0 : i32
    %c0_i32_1 = arith.constant 0 : i32
    return %c0_i32, %c0_i32_0 : i32, i32
  }
  func.func @transform_4(%arg0: i32) -> (i32, i32) {
    %c0_i32 = arith.constant 0 : i32
    %c0_i32_0 = arith.constant 0 : i32
    %c0_i32_1 = arith.constant 0 : i32
    return %c0_i32, %c0_i32_0 : i32, i32
  }
  func.func @transform_5(%arg0: i32) -> (i32, i32) {
    %c0_i32 = arith.constant 0 : i32
    %c0_i32_0 = arith.constant 0 : i32
    %c0_i32_1 = arith.constant 0 : i32
    return %c0_i32, %c0_i32_0 : i32, i32
  }
  func.func @transform_6(%arg0: i32) -> (i32, i32, i32) {
    %c0_i32 = arith.constant 0 : i32
    %c0_i32_0 = arith.constant 0 : i32
    %c0_i32_1 = arith.constant 0 : i32
    return %arg0, %c0_i32, %c0_i32_0 : i32, i32, i32
  }
}

</mosaic_0001>

<llo_original>
// kernel: tpu_custom_call.1
$region0: #{tpu_custom_call.1}
  #allocation0 [shape = 'u32[]', space=smem, size = 0x4, offset = 0x4, fixed_abs, tag = 'smem constant byte address 0x4 - core index']
  #allocation1 [shape = 'u32[72,128]{1,0:T(1,128)}', space=vmem, size = 0x9000, scoped, tag = 'internal scratch']
  %s0 = inlined_call_operand.vmem [shape: f32[16,8,64], index: 0, kind: input, shape index: {}]
  %s1 = inlined_call_operand.vmem [shape: f32[8,8], index: 1, kind: input, shape index: {}]
  %s2 = inlined_call_operand.vmem [shape: f32[1,8], index: 2, kind: input, shape index: {}]
  %s3 = inlined_call_operand.vmem [shape: f32[8,1], index: 3, kind: input, shape index: {}]
  %s4 = inlined_call_operand.vmem [shape: f32[96,8], index: 4, kind: input, shape index: {}]
  %s5 = inlined_call_operand.vmem [shape: f32[96,1], index: 5, kind: input, shape index: {}]
  %s6 = inlined_call_operand.vmem [shape: f32[16,96,64], index: 6, kind: output, shape index: {}]
  %s7 = sld [smem:[#allocation0]]
  $region57: #{tpu_custom_call.1} parent=0
    _
  %s9 = ssub.s32 1, %s7
  %s10 = scalar_select 0, %s9, %s7
  loop: start=0, step=1, limit=10
  $region2: #{tpu_custom_call.1} parent=0 // loop_pre_header
    _
  $region3: #{tpu_custom_call.1} parent=0 // loop_header
    %s12 = sphi 0, %s16
    %p13 = scmp.ge.s32.totalorder %s12, 10
    %s22 = sphi 0, %s24
    %s25 = sphi 0, %s22
    %s26 = sphi 0, %s25
    %s42 = sphi 0, %s26
    %s46 = sphi 0, %s46
    %s48 = sphi 0, %s46
    %s49 = sphi 0, %s48
    %s63 = sphi 0, %s49
    %s67 = sphi 0, %s67
    %s69 = sphi 0, %s67
    %s70 = sphi 0, %s69
    %s84 = sphi 0, %s70
    %s88 = sphi 0, %s88
    %s90 = sphi 0, %s88
    %s91 = sphi 0, %s90
    %s105 = sphi 0, %s91
    %s109 = sphi 0, %s109
    %s111 = sphi 0, %s109
    %s112 = sphi 0, %s111
    %s126 = sphi 0, %s112
    %s130 = sphi 0, %s130
    %s132 = sphi 0, %s130
    %s133 = sphi 0, %s132
    %s147 = sphi 0, %s133
    %s153 = sphi 0, %s155
    %s156 = sphi 0, %s153
    %s157 = sphi 0, %s156
    %s173 = sphi 0, %s157
  $region4: #{tpu_custom_call.1} parent=0 // loop_header_branch
    %15 = sbr.rel (%p13) target = $region8
  $region5: #{tpu_custom_call.1} parent=0 // loop_body
    %s17 = ssub.s32 %s12, 1
    %s18 = ssub.s32 %s12, 2
    %s19 = sadd.s32 %s12, 1
    %s20 = ssub.s32 %s12, %s19
    %p21 = scmp.eq.s32.totalorder %s20, 0
    %s23 = sadd.s32 %s22, 1
    %s24 = scalar_select %p21, %s22, %s23
    %p27 = pneg %p21
    %p28 = scmp.eq.s32.totalorder %s12, 7
    %p29 = por %p27, %p28
    %p30 = scmp.ne.s32.totalorder %s22, %s25
    %p31 = scmp.eq.s32.totalorder %s12, 0
    %p32 = por %p30, %p31
    %p33 = scmp.ne.s32.totalorder %s22, %s25
    %p34 = scmp.eq.s32.totalorder %s17, 7
    %p35 = por %p33, %p34
    %p36 = scmp.ne.s32.totalorder %s25, %s26
    %p37 = scmp.eq.s32.totalorder %s17, 0
    %p38 = por %p36, %p37
    %p39 = scmp.ne.s32.totalorder %s25, %s26
    %p40 = scmp.eq.s32.totalorder %s18, 7
    %p41 = por %p39, %p40
    %p43 = scmp.ne.s32.totalorder %s26, %s42
    %p44 = scmp.eq.s32.totalorder %s18, 0
    %p45 = por %p43, %p44
    %s47 = sadd.s32 %s46, 1
    %p50 = scmp.eq.s32.totalorder %s12, 7
    %p51 = scmp.ne.s32.totalorder %s46, %s48
    %p52 = scmp.eq.s32.totalorder %s12, 0
    %p53 = por %p51, %p52
    %p54 = scmp.ne.s32.totalorder %s46, %s48
    %p55 = scmp.eq.s32.totalorder %s17, 7
    %p56 = por %p54, %p55
    %p57 = scmp.ne.s32.totalorder %s48, %s49
    %p58 = scmp.eq.s32.totalorder %s17, 0
    %p59 = por %p57, %p58
    %p60 = scmp.ne.s32.totalorder %s48, %s49
    %p61 = scmp.eq.s32.totalorder %s18, 7
    %p62 = por %p60, %p61
    %p64 = scmp.ne.s32.totalorder %s49, %s63
    %p65 = scmp.eq.s32.totalorder %s18, 0
    %p66 = por %p64, %p65
    %s68 = sadd.s32 %s67, 1
    %p71 = scmp.eq.s32.totalorder %s12, 7
    %p72 = scmp.ne.s32.totalorder %s67, %s69
    %p73 = scmp.eq.s32.totalorder %s12, 0
    %p74 = por %p72, %p73
    %p75 = scmp.ne.s32.totalorder %s67, %s69
    %p76 = scmp.eq.s32.totalorder %s17, 7
    %p77 = por %p75, %p76
    %p78 = scmp.ne.s32.totalorder %s69, %s70
    %p79 = scmp.eq.s32.totalorder %s17, 0
    %p80 = por %p78, %p79
    %p81 = scmp.ne.s32.totalorder %s69, %s70
    %p82 = scmp.eq.s32.totalorder %s18, 7
    %p83 = por %p81, %p82
    %p85 = scmp.ne.s32.totalorder %s70, %s84
    %p86 = scmp.eq.s32.totalorder %s18, 0
    %p87 = por %p85, %p86
    %s89 = sadd.s32 %s88, 1
    %p92 = scmp.eq.s32.totalorder %s12, 7
    %p93 = scmp.ne.s32.totalorder %s88, %s90
    %p94 = scmp.eq.s32.totalorder %s12, 0
    %p95 = por %p93, %p94
    %p96 = scmp.ne.s32.totalorder %s88, %s90
    %p97 = scmp.eq.s32.totalorder %s17, 7
    %p98 = por %p96, %p97
    %p99 = scmp.ne.s32.totalorder %s90, %s91
    %p100 = scmp.eq.s32.totalorder %s17, 0
    %p101 = por %p99, %p100
    %p102 = scmp.ne.s32.totalorder %s90, %s91
    %p103 = scmp.eq.s32.totalorder %s18, 7
    %p104 = por %p102, %p103
    %p106 = scmp.ne.s32.totalorder %s91, %s105
    %p107 = scmp.eq.s32.totalorder %s18, 0
    %p108 = por %p106, %p107
    %s110 = sadd.s32 %s109, 1
    %p113 = scmp.eq.s32.totalorder %s12, 7
    %p114 = scmp.ne.s32.totalorder %s109, %s111
    %p115 = scmp.eq.s32.totalorder %s12, 0
    %p116 = por %p114, %p115
    %p117 = scmp.ne.s32.totalorder %s109, %s111
    %p118 = scmp.eq.s32.totalorder %s17, 7
    %p119 = por %p117, %p118
    %p120 = scmp.ne.s32.totalorder %s111, %s112
    %p121 = scmp.eq.s32.totalorder %s17, 0
    %p122 = por %p120, %p121
    %p123 = scmp.ne.s32.totalorder %s111, %s112
    %p124 = scmp.eq.s32.totalorder %s18, 7
    %p125 = por %p123, %p124
    %p127 = scmp.ne.s32.totalorder %s112, %s126
    %p128 = scmp.eq.s32.totalorder %s18, 0
    %p129 = por %p127, %p128
    %s131 = sadd.s32 %s130, 1
    %p134 = scmp.eq.s32.totalorder %s12, 7
    %p135 = scmp.ne.s32.totalorder %s130, %s132
    %p136 = scmp.eq.s32.totalorder %s12, 0
    %p137 = por %p135, %p136
    %p138 = scmp.ne.s32.totalorder %s130, %s132
    %p139 = scmp.eq.s32.totalorder %s17, 7
    %p140 = por %p138, %p139
    %p141 = scmp.ne.s32.totalorder %s132, %s133
    %p142 = scmp.eq.s32.totalorder %s17, 0
    %p143 = por %p141, %p142
    %p144 = scmp.ne.s32.totalorder %s132, %s133
    %p145 = scmp.eq.s32.totalorder %s18, 7
    %p146 = por %p144, %p145
    %p148 = scmp.ne.s32.totalorder %s133, %s147
    %p149 = scmp.eq.s32.totalorder %s18, 0
    %p150 = por %p148, %p149
    %s151 = ssub.s32 %s12, %s19
    %p152 = scmp.eq.s32.totalorder %s151, 0
    %s154 = sadd.s32 %s153, 1
    %s155 = scalar_select %p152, %s153, %s154
    %p158 = pneg %p152
    %p159 = scmp.eq.s32.totalorder %s12, 7
    %p160 = por %p158, %p159
    %p161 = scmp.ne.s32.totalorder %s153, %s156
    %p162 = scmp.eq.s32.totalorder %s12, 0
    %p163 = por %p161, %p162
    %p164 = scmp.ne.s32.totalorder %s153, %s156
    %p165 = scmp.eq.s32.totalorder %s17, 7
    %p166 = por %p164, %p165
    %p167 = scmp.ne.s32.totalorder %s156, %s157
    %p168 = scmp.eq.s32.totalorder %s17, 0
    %p169 = por %p167, %p168
    %p170 = scmp.ne.s32.totalorder %s156, %s157
    %p171 = scmp.eq.s32.totalorder %s18, 7
    %p172 = por %p170, %p171
    %p174 = scmp.ne.s32.totalorder %s157, %s173
    %p175 = scmp.eq.s32.totalorder %s18, 0
    %p176 = por %p174, %p175
    %p177 = scmp.le.s32.totalorder 1, %s12
    %p178 = scmp.lt.s32.totalorder %s12, 9
    %p179 = pnand %p177, %p178
    %p180 = pneg %p179
    // Predicated region
    $region9: #{tpu_custom_call.1} parent=5 // pred_check
      _
    $region10: #{tpu_custom_call.1} parent=5 // pred_check_branch
      %182 = sbr.rel (%p179) target = $region12
    $region11: #{tpu_custom_call.1} parent=5 // pred_region
      %s183 = ssub.s32 %s12, 1
      // Predicated region
      $region13: #{tpu_custom_call.1} parent=11 // pred_check
        %p184 = pneg %p59
      $region14: #{tpu_custom_call.1} parent=11 // pred_check_branch
        %186 = sbr.rel (%p184) target = $region16
      $region15: #{tpu_custom_call.1} parent=11 // pred_region
        _
      $region16: #{tpu_custom_call.1} parent=11 // pred_fallthru
        _
      // Predicated region
      $region17: #{tpu_custom_call.1} parent=11 // pred_check
        %p187 = pneg %p80
      $region18: #{tpu_custom_call.1} parent=11 // pred_check_branch
        %189 = sbr.rel (%p187) target = $region20
      $region19: #{tpu_custom_call.1} parent=11 // pred_region
        _
      $region20: #{tpu_custom_call.1} parent=11 // pred_fallthru
        _
      // Predicated region
      $region21: #{tpu_custom_call.1} parent=11 // pred_check
        %p190 = pneg %p101
      $region22: #{tpu_custom_call.1} parent=11 // pred_check_branch
        %192 = sbr.rel (%p190) target = $region24
      $region23: #{tpu_custom_call.1} parent=11 // pred_region
        _
      $region24: #{tpu_custom_call.1} parent=11 // pred_fallthru
        _
      // Predicated region
      $region25: #{tpu_custom_call.1} parent=11 // pred_check
        %p193 = pneg %p122
      $region26: #{tpu_custom_call.1} parent=11 // pred_check_branch
        %195 = sbr.rel (%p193) target = $region28
      $region27: #{tpu_custom_call.1} parent=11 // pred_region
        _
      $region28: #{tpu_custom_call.1} parent=11 // pred_fallthru
        _
      // Predicated region
      $region29: #{tpu_custom_call.1} parent=11 // pred_check
        %p196 = pneg %p143
      $region30: #{tpu_custom_call.1} parent=11 // pred_check_branch
        %198 = sbr.rel (%p196) target = $region32
      $region31: #{tpu_custom_call.1} parent=11 // pred_region
        _
      $region32: #{tpu_custom_call.1} parent=11 // pred_fallthru
        _
    $region12: #{tpu_custom_call.1} parent=5 // pred_fallthru
      _
    %p199 = scmp.lt.s32.totalorder %s12, 8
    // Predicated region
    $region33: #{tpu_custom_call.1} parent=5 // pred_check
      %p200 = pneg %p199
    $region34: #{tpu_custom_call.1} parent=5 // pred_check_branch
      %202 = sbr.rel (%p200) target = $region36
    $region35: #{tpu_custom_call.1} parent=5 // pred_region
      // Predicated region
      $region37: #{tpu_custom_call.1} parent=35 // pred_check
        %p203 = pneg %p32
      $region38: #{tpu_custom_call.1} parent=35 // pred_check_branch
        %205 = sbr.rel (%p203) target = $region40
      $region39: #{tpu_custom_call.1} parent=35 // pred_region
        %s206 = smul.u32 2, %s12
        %p207 = scmp.lt.s32.totalorder %s206, 15
        %s208 = scalar_select %p207, %s206, 15
        %s209 = smul.addr %s208, 8
        %s210 = scalar_lea.vmem %s0, %s209
        %s211 = smul.u32 2, %s12
      $region40: #{tpu_custom_call.1} parent=35 // pred_fallthru
        _
    $region36: #{tpu_custom_call.1} parent=5 // pred_fallthru
      _
    %p212 = scmp.le.s32.totalorder 1, %s12
    %p213 = scmp.lt.s32.totalorder %s12, 9
    %p214 = pnand %p212, %p213
    %p215 = pneg %p214
    // Predicated region
    $region41: #{tpu_custom_call.1} parent=5 // pred_check
      _
    $region42: #{tpu_custom_call.1} parent=5 // pred_check_branch
      %217 = sbr.rel (%p214) target = $region44
    $region43: #{tpu_custom_call.1} parent=5 // pred_region
      %s218 = ssub.s32 %s12, 1
      %s219 = smul.u32 2, %s17
      %p220 = scmp.lt.s32.totalorder %s219, 15
      %s221 = scalar_select %p220, %s219, 15
      %s222 = smul.addr %s221, 8
      %s223 = scalar_lea.vmem %s0, %s222
      %p224 = pneg %p38
      %p225 = pneg %p35
      %p226 = pneg %p59
      %p227 = pneg %p56
      %p228 = pneg %p80
      %p229 = pneg %p77
      %p230 = pneg %p101
      %p231 = pneg %p98
      %p232 = pneg %p122
      %p233 = pneg %p119
      %p234 = pneg %p143
      %p235 = pneg %p140
      %p236 = pneg %p169
      %p237 = pneg %p166
      %s238 = smul.u32 2, %s17
      %p239 = scmp.lt.s32.totalorder %s238, 15
      %s240 = scalar_select %p239, %s238, 15
      %s241 = smul.addr %s240, 12
      %s242 = smul.addr %s241, 8
      %s243 = scalar_lea.vmem %s6, %s242
      %s244 = smul.u32 2, %s17
      %p245 = scmp.lt.s32.totalorder %s244, 15
      %s246 = scalar_select %p245, %s244, 15
      %s247 = smul.addr %s246, 8
      %s248 = scalar_lea.vmem %s0, %s247
      %s249 = smul.u32 2, %s17
      %s250 = smul.u32 2, %s17
      %p251 = scmp.lt.s32.totalorder %s250, 15
      %s252 = scalar_select %p251, %s250, 15
      %s253 = smul.addr %s252, 12
      %s254 = smul.addr %s253, 8
      %s255 = scalar_lea.vmem %s6, %s254
      %s256 = smul.u32 2, %s17
      %v257 = vld [vmem:[%s248] sm:$0xff]
      %v258 = vld [vmem:[%s248 + $0x8] sm:$0xff]
      %v259 = vld [vmem:[%s1] sm:$0xff]
      %vm260 = vcmask 523264
      %v261 = vsel %vm260, %v257, 0.0
      %262 = vadd.xlane.f32.xlu0 %v261
      %v263 = vpop.xlane.xlu0 %262
      %v264 = vsel %vm260, %v258, 0.0
      %265 = vadd.xlane.f32.xlu0 %v264
      %v266 = vpop.xlane.xlu0 %265
      %v269 = vlaneseq
      %v270 = vand.u32 %v269, 127
      %v271 = vperm.slane %v263, %v270
      %v272 = vperm.slane %v266, %v270
      %vm273 = vcmask 1041409
      %v274 = vsel %vm273, %v272, %v271
      %vm275 = vcmask 64512
      %v276 = vsel %vm275, %v274, 0
      %278 = vmatpush.msra.mxu0 0.0
      %279 = vmatpush.msra.mxu0 0.0
      %280 = vmatpush.msra.mxu0 0.0
      %281 = vmatpush.msra.mxu0 0.0
      %282 = vmatpush.msra.mxu0 0.0
      %283 = vmatpush.msra.mxu0 0.0
      %284 = vmatpush.msra.mxu0 0.0
      %285 = vmatpush.msra.mxu0 0.0
      %286 = vmatpush.msra.mxu0 0.0
      %287 = vmatpush.msra.mxu0 0.0
      %288 = vmatpush.msra.mxu0 0.0
      %289 = vmatpush.msra.mxu0 0.0
      %290 = vmatpush.msra.mxu0 0.0
      %291 = vmatpush.msra.mxu0 0.0
      %292 = vmatpush.msra.mxu0 0.0
      %293 = vmatpush.msra.mxu0 %v259
      %294 = vmatmul.f32.gmra.mxu0 %v276
      %v295 = vpop.f32.mrf.mxu0
      %v296 = vadd.f32 0.0, %v295
      %297 = vdwg.mxu0
      %v298 = vperm.slane %v296, 0
      %v299 = vlaneseq
      %v300 = vshrl.u32 %v299, 7
      %302 = vset.pattern.permute.xlu0 %v300
      %303 = vperm.xlu0 %302, %v298
      %v304 = vpop.permute.xlu0 %303
      %v305 = vperm.slane %v296, 1
      %v306 = vlaneseq
      %v307 = vshrl.u32 %v306, 7
      %309 = vset.pattern.permute.xlu0 %v307
      %310 = vperm.xlu0 %309, %v305
      %v311 = vpop.permute.xlu0 %310
      %v312 = vsub.f32 %v257, %v304
      %v313 = vsub.f32 %v258, %v311
      %v314 = vmul.f32 %v312, %v312
      %v315 = vmul.f32 %v313, %v313
      %v316 = vsel %vm260, %v314, 0.0
      %317 = vadd.xlane.f32.xlu0 %v316
      %v318 = vpop.xlane.xlu0 %317
      %v319 = vsel %vm260, %v315, 0.0
      %320 = vadd.xlane.f32.xlu0 %v319
      %v321 = vpop.xlane.xlu0 %320
      %v324 = vperm.slane %v318, %v270
      %v325 = vperm.slane %v321, %v270
      %v326 = vsel %vm273, %v325, %v324
      %v327 = vsel %vm275, %v326, 0
      %329 = vmatpush.msra.mxu0 0.0
      %330 = vmatpush.msra.mxu0 0.0
      %331 = vmatpush.msra.mxu0 0.0
      %332 = vmatpush.msra.mxu0 0.0
      %333 = vmatpush.msra.mxu0 0.0
      %334 = vmatpush.msra.mxu0 0.0
      %335 = vmatpush.msra.mxu0 0.0
      %336 = vmatpush.msra.mxu0 0.0
      %337 = vmatpush.msra.mxu0 0.0
      %338 = vmatpush.msra.mxu0 0.0
      %339 = vmatpush.msra.mxu0 0.0
      %340 = vmatpush.msra.mxu0 0.0
      %341 = vmatpush.msra.mxu0 0.0
      %342 = vmatpush.msra.mxu0 0.0
      %343 = vmatpush.msra.mxu0 0.0
      %344 = vmatpush.msra.mxu0 %v259
      %345 = vmatmul.f32.gmra.mxu0 %v327
      %v346 = vpop.f32.mrf.mxu0
      %v347 = vadd.f32 1e-05, %v346
      %348 = vdwg.mxu0
      %v349 = vrsqrt.pop %v347
      %v350 = vmul.f32 %v349, %v347
      %v351 = vmul.f32 %v350, %v349
      %v352 = vmul.f32 0.5, %v351
      %v353 = vsub.f32 1.5, %v352
      %v354 = vmul.f32 %v349, %v353
      %vm355 = vweird.f32 %v347
      %vm356 = vweird.f32 %v349
      %vm357 = vmor %vm355, %vm356
      %v358 = vsel %vm357, %v349, %v354
      %v359 = vld [vmem:[%s2] sm:$0x1]
      %v361 = vperm.slane %v359, 0
      %v363 = vmul.f32 %v358, %v361
      %v364 = vperm.slane %v363, 0
      %v365 = vlaneseq
      %v366 = vshrl.u32 %v365, 7
      %368 = vset.pattern.permute.xlu0 %v366
      %369 = vperm.xlu0 %368, %v364
      %v370 = vpop.permute.xlu0 %369
      %v371 = vperm.slane %v363, 1
      %v372 = vlaneseq
      %v373 = vshrl.u32 %v372, 7
      %375 = vset.pattern.permute.xlu0 %v373
      %376 = vperm.xlu0 %375, %v371
      %v377 = vpop.permute.xlu0 %376
      %v378 = vmul.f32 %v312, %v370
      %v379 = vmul.f32 %v313, %v377
      %v380 = vld [vmem:[%s3] sm:$0xff]
      %382 = vset.pattern.permute.xlu0 0
      %383 = vperm.xlu0 %382, %v380
      %v384 = vpop.permute.xlu0 %383
      %v386 = vadd.f32 %v378, %v384
      %v387 = vadd.f32 %v379, %v384
      %v388 = vld [vmem:[%s4] sm:$0xff]
      %v389 = vld [vmem:[%s4 + $0x8] sm:$0xff]
      %v390 = vld [vmem:[%s4 + $0x10] sm:$0xff]
      %v391 = vld [vmem:[%s4 + $0x18] sm:$0xff]
      %v392 = vld [vmem:[%s4 + $0x20] sm:$0xff]
      %v393 = vld [vmem:[%s4 + $0x28] sm:$0xff]
      %v394 = vld [vmem:[%s4 + $0x30] sm:$0xff]
      %v395 = vld [vmem:[%s4 + $0x38] sm:$0xff]
      %v396 = vld [vmem:[%s4 + $0x40] sm:$0xff]
      %v397 = vld [vmem:[%s4 + $0x48] sm:$0xff]
      %v398 = vld [vmem:[%s4 + $0x50] sm:$0xff]
      %v399 = vld [vmem:[%s4 + $0x58] sm:$0xff]
      %v400 = vld [vmem:[%s5] sm:$0xff]
      %v401 = vld [vmem:[%s5 + $0x8] sm:$0xff]
      %v402 = vld [vmem:[%s5 + $0x10] sm:$0xff]
      %v403 = vld [vmem:[%s5 + $0x18] sm:$0xff]
      %v404 = vld [vmem:[%s5 + $0x20] sm:$0xff]
      %v405 = vld [vmem:[%s5 + $0x28] sm:$0xff]
      %v406 = vld [vmem:[%s5 + $0x30] sm:$0xff]
      %v407 = vld [vmem:[%s5 + $0x38] sm:$0xff]
      %v408 = vld [vmem:[%s5 + $0x40] sm:$0xff]
      %v409 = vld [vmem:[%s5 + $0x48] sm:$0xff]
      %v410 = vld [vmem:[%s5 + $0x50] sm:$0xff]
      %v411 = vld [vmem:[%s5 + $0x58] sm:$0xff]
      %413 = vset.pattern.permute.xlu0 0
      %414 = vperm.xlu0 %413, %v400
      %v415 = vpop.permute.xlu0 %414
      %418 = vset.pattern.permute.xlu0 0
      %419 = vperm.xlu0 %418, %v401
      %v420 = vpop.permute.xlu0 %419
      %423 = vset.pattern.permute.xlu0 0
      %424 = vperm.xlu0 %423, %v402
      %v425 = vpop.permute.xlu0 %424
      %428 = vset.pattern.permute.xlu0 0
      %429 = vperm.xlu0 %428, %v403
      %v430 = vpop.permute.xlu0 %429
      %433 = vset.pattern.permute.xlu0 0
      %434 = vperm.xlu0 %433, %v404
      %v435 = vpop.permute.xlu0 %434
      %438 = vset.pattern.permute.xlu0 0
      %439 = vperm.xlu0 %438, %v405
      %v440 = vpop.permute.xlu0 %439
      %443 = vset.pattern.permute.xlu0 0
      %444 = vperm.xlu0 %443, %v406
      %v445 = vpop.permute.xlu0 %444
      %448 = vset.pattern.permute.xlu0 0
      %449 = vperm.xlu0 %448, %v407
      %v450 = vpop.permute.xlu0 %449
      %453 = vset.pattern.permute.xlu0 0
      %454 = vperm.xlu0 %453, %v408
      %v455 = vpop.permute.xlu0 %454
      %458 = vset.pattern.permute.xlu0 0
      %459 = vperm.xlu0 %458, %v409
      %v460 = vpop.permute.xlu0 %459
      %463 = vset.pattern.permute.xlu0 0
      %464 = vperm.xlu0 %463, %v410
      %v465 = vpop.permute.xlu0 %464
      %468 = vset.pattern.permute.xlu0 0
      %469 = vperm.xlu0 %468, %v411
      %v470 = vpop.permute.xlu0 %469
      %v473 = vsel %vm275, %v388, 0
      %v476 = vsel %vm275, %v389, 0
      %v479 = vsel %vm275, %v390, 0
      %v482 = vsel %vm275, %v391, 0
      %v485 = vsel %vm275, %v392, 0
      %v488 = vsel %vm275, %v393, 0
      %v491 = vsel %vm275, %v394, 0
      %v494 = vsel %vm275, %v395, 0
      %v497 = vsel %vm275, %v396, 0
      %v500 = vsel %vm275, %v397, 0
      %v503 = vsel %vm275, %v398, 0
      %v506 = vsel %vm275, %v399, 0
      %508 = vmatpush.msra.mxu0 0.0
      %509 = vmatpush.msra.mxu0 0.0
      %510 = vmatpush.msra.mxu0 0.0
      %511 = vmatpush.msra.mxu0 0.0
      %512 = vmatpush.msra.mxu0 0.0
      %513 = vmatpush.msra.mxu0 0.0
      %514 = vmatpush.msra.mxu0 0.0
      %515 = vmatpush.msra.mxu0 0.0
      %516 = vmatpush.msra.mxu0 0.0
      %517 = vmatpush.msra.mxu0 0.0
      %518 = vmatpush.msra.mxu0 0.0
      %519 = vmatpush.msra.mxu0 0.0
      %520 = vmatpush.msra.mxu0 0.0
      %521 = vmatpush.msra.mxu0 0.0
      %522 = vmatpush.msra.mxu0 0.0
      %523 = vmatpush.msra.mxu0 %v386
      %524 = vmatmul.f32.gmra.mxu0 %v473
      %v525 = vpop.f32.mrf.mxu0
      %v526 = vadd.f32 %v415, %v525
      %527 = vmatmul.f32.gmra.mxu0 %v476
      %v528 = vpop.f32.mrf.mxu0
      %v529 = vadd.f32 %v420, %v528
      %530 = vmatmul.f32.gmra.mxu0 %v479
      %v531 = vpop.f32.mrf.mxu0
      %v532 = vadd.f32 %v425, %v531
      %533 = vmatmul.f32.gmra.mxu0 %v482
      %v534 = vpop.f32.mrf.mxu0
      %v535 = vadd.f32 %v430, %v534
      %536 = vmatmul.f32.gmra.mxu0 %v485
      %v537 = vpop.f32.mrf.mxu0
      %v538 = vadd.f32 %v435, %v537
      %539 = vmatmul.f32.gmra.mxu0 %v488
      %v540 = vpop.f32.mrf.mxu0
      %v541 = vadd.f32 %v440, %v540
      %542 = vmatmul.f32.gmra.mxu0 %v491
      %v543 = vpop.f32.mrf.mxu0
      %v544 = vadd.f32 %v445, %v543
      %545 = vmatmul.f32.gmra.mxu0 %v494
      %v546 = vpop.f32.mrf.mxu0
      %v547 = vadd.f32 %v450, %v546
      %548 = vmatmul.f32.gmra.mxu0 %v497
      %v549 = vpop.f32.mrf.mxu0
      %v550 = vadd.f32 %v455, %v549
      %551 = vmatmul.f32.gmra.mxu0 %v500
      %v552 = vpop.f32.mrf.mxu0
      %v553 = vadd.f32 %v460, %v552
      %554 = vmatmul.f32.gmra.mxu0 %v503
      %v555 = vpop.f32.mrf.mxu0
      %v556 = vadd.f32 %v465, %v555
      %557 = vmatmul.f32.gmra.mxu0 %v506
      %v558 = vpop.f32.mrf.mxu0
      %v559 = vadd.f32 %v470, %v558
      %560 = vdwg.mxu0
      %561 = vst.msk [vmem:[%s255] sm:$0xff] %vm260, %v526
      %562 = vst.msk [vmem:[%s255 + $0x8] sm:$0xff] %vm260, %v529
      %563 = vst.msk [vmem:[%s255 + $0x10] sm:$0xff] %vm260, %v532
      %564 = vst.msk [vmem:[%s255 + $0x18] sm:$0xff] %vm260, %v535
      %565 = vst.msk [vmem:[%s255 + $0x20] sm:$0xff] %vm260, %v538
      %566 = vst.msk [vmem:[%s255 + $0x28] sm:$0xff] %vm260, %v541
      %567 = vst.msk [vmem:[%s255 + $0x30] sm:$0xff] %vm260, %v544
      %568 = vst.msk [vmem:[%s255 + $0x38] sm:$0xff] %vm260, %v547
      %569 = vst.msk [vmem:[%s255 + $0x40] sm:$0xff] %vm260, %v550
      %570 = vst.msk [vmem:[%s255 + $0x48] sm:$0xff] %vm260, %v553
      %571 = vst.msk [vmem:[%s255 + $0x50] sm:$0xff] %vm260, %v556
      %572 = vst.msk [vmem:[%s255 + $0x58] sm:$0xff] %vm260, %v559
      %573 = vmatpush.msra.mxu0 0.0
      %574 = vmatpush.msra.mxu0 0.0
      %575 = vmatpush.msra.mxu0 0.0
      %576 = vmatpush.msra.mxu0 0.0
      %577 = vmatpush.msra.mxu0 0.0
      %578 = vmatpush.msra.mxu0 0.0
      %579 = vmatpush.msra.mxu0 0.0
      %580 = vmatpush.msra.mxu0 0.0
      %581 = vmatpush.msra.mxu0 0.0
      %582 = vmatpush.msra.mxu0 0.0
      %583 = vmatpush.msra.mxu0 0.0
      %584 = vmatpush.msra.mxu0 0.0
      %585 = vmatpush.msra.mxu0 0.0
      %586 = vmatpush.msra.mxu0 0.0
      %587 = vmatpush.msra.mxu0 0.0
      %588 = vmatpush.msra.mxu0 %v387
      %589 = vmatmul.f32.gmra.mxu0 %v473
      %v590 = vpop.f32.mrf.mxu0
      %v591 = vadd.f32 %v415, %v590
      %592 = vmatmul.f32.gmra.mxu0 %v476
      %v593 = vpop.f32.mrf.mxu0
      %v594 = vadd.f32 %v420, %v593
      %595 = vmatmul.f32.gmra.mxu0 %v479
      %v596 = vpop.f32.mrf.mxu0
      %v597 = vadd.f32 %v425, %v596
      %598 = vmatmul.f32.gmra.mxu0 %v482
      %v599 = vpop.f32.mrf.mxu0
      %v600 = vadd.f32 %v430, %v599
      %601 = vmatmul.f32.gmra.mxu0 %v485
      %v602 = vpop.f32.mrf.mxu0
      %v603 = vadd.f32 %v435, %v602
      %604 = vmatmul.f32.gmra.mxu0 %v488
      %v605 = vpop.f32.mrf.mxu0
      %v606 = vadd.f32 %v440, %v605
      %607 = vmatmul.f32.gmra.mxu0 %v491
      %v608 = vpop.f32.mrf.mxu0
      %v609 = vadd.f32 %v445, %v608
      %610 = vmatmul.f32.gmra.mxu0 %v494
      %v611 = vpop.f32.mrf.mxu0
      %v612 = vadd.f32 %v450, %v611
      %613 = vmatmul.f32.gmra.mxu0 %v497
      %v614 = vpop.f32.mrf.mxu0
      %v615 = vadd.f32 %v455, %v614
      %616 = vmatmul.f32.gmra.mxu0 %v500
      %v617 = vpop.f32.mrf.mxu0
      %v618 = vadd.f32 %v460, %v617
      %619 = vmatmul.f32.gmra.mxu0 %v503
      %v620 = vpop.f32.mrf.mxu0
      %v621 = vadd.f32 %v465, %v620
      %622 = vmatmul.f32.gmra.mxu0 %v506
      %v623 = vpop.f32.mrf.mxu0
      %v624 = vadd.f32 %v470, %v623
      %625 = vdwg.mxu0
      %s626 = scalar_lea.vmem %s255, 96
      %627 = vst.msk [vmem:[%s626] sm:$0xff] %vm260, %v591
      %628 = vst.msk [vmem:[%s626 + $0x8] sm:$0xff] %vm260, %v594
      %629 = vst.msk [vmem:[%s626 + $0x10] sm:$0xff] %vm260, %v597
      %630 = vst.msk [vmem:[%s626 + $0x18] sm:$0xff] %vm260, %v600
      %631 = vst.msk [vmem:[%s626 + $0x20] sm:$0xff] %vm260, %v603
      %632 = vst.msk [vmem:[%s626 + $0x28] sm:$0xff] %vm260, %v606
      %633 = vst.msk [vmem:[%s626 + $0x30] sm:$0xff] %vm260, %v609
      %634 = vst.msk [vmem:[%s626 + $0x38] sm:$0xff] %vm260, %v612
      %635 = vst.msk [vmem:[%s626 + $0x40] sm:$0xff] %vm260, %v615
      %636 = vst.msk [vmem:[%s626 + $0x48] sm:$0xff] %vm260, %v618
      %637 = vst.msk [vmem:[%s626 + $0x50] sm:$0xff] %vm260, %v621
      %638 = vst.msk [vmem:[%s626 + $0x58] sm:$0xff] %vm260, %v624
      %s639 = smul.u32 2, %s17
      %p640 = scmp.lt.s32.totalorder %s639, 15
      %s641 = scalar_select %p640, %s639, 15
      %s642 = smul.addr %s641, 12
      %s643 = smul.addr %s642, 8
      %s644 = scalar_lea.vmem %s6, %s643
      // Predicated region
      $region45: #{tpu_custom_call.1} parent=43 // pred_check
        %p645 = pneg %p166
      $region46: #{tpu_custom_call.1} parent=43 // pred_check_branch
        %647 = sbr.rel (%p645) target = $region48
      $region47: #{tpu_custom_call.1} parent=43 // pred_region
        %s648 = smul.u32 2, %s17
      $region48: #{tpu_custom_call.1} parent=43 // pred_fallthru
        _
    $region44: #{tpu_custom_call.1} parent=5 // pred_fallthru
      _
    %p649 = scmp.le.s32.totalorder 2, %s12
    // Predicated region
    $region49: #{tpu_custom_call.1} parent=5 // pred_check
      %p650 = pneg %p649
    $region50: #{tpu_custom_call.1} parent=5 // pred_check_branch
      %652 = sbr.rel (%p650) target = $region52
    $region51: #{tpu_custom_call.1} parent=5 // pred_region
      %s653 = ssub.s32 %s12, 2
      // Predicated region
      $region53: #{tpu_custom_call.1} parent=51 // pred_check
        %p654 = pneg %p172
      $region54: #{tpu_custom_call.1} parent=51 // pred_check_branch
        %656 = sbr.rel (%p654) target = $region56
      $region55: #{tpu_custom_call.1} parent=51 // pred_region
        %s657 = smul.u32 2, %s18
        %p658 = scmp.lt.s32.totalorder %s657, 15
        %s659 = scalar_select %p658, %s657, 15
        %s660 = smul.addr %s659, 12
        %s661 = smul.addr %s660, 8
        %s662 = scalar_lea.vmem %s6, %s661
      $region56: #{tpu_custom_call.1} parent=51 // pred_fallthru
        _
    $region52: #{tpu_custom_call.1} parent=5 // pred_fallthru
      _
  $region6: #{tpu_custom_call.1} parent=0 // loop_footer
    %s16 = sadd.s32 1, %s12
  $region7: #{tpu_custom_call.1} parent=0 // loop_footer_branch
    %11 = sbr.rel target = $region3
  $region8: #{tpu_custom_call.1} parent=0 // loop_exit
    _

</llo_original>
